<compile_context>
chip_gen: v7x
topology: tpu7x:2x2x1
jax: 0.10.0
libtpu: 0.0.40
codegen_flags: <defaults>
</compile_context>

<pallas_src>
import functools

import jax
import jax.numpy as jnp
import numpy as np
from jax.experimental import pallas as pl
from jax.experimental.pallas import tpu as pltpu


def _round_up(a, b):
    return ((a + b - 1) // b) * b


def _cdiv(a, b):
    return (a + b - 1) // b


def _ranknet_kernel(scalar_ref, p_ref, n_ref, out_ref, acc_ref):
    # scalar_ref: SMEM (2,) int32 -> [size, last_live_tile]
    # p_ref, n_ref: (tile_r, lanes) f32 VMEM tiles (positive / negative scores)
    # out_ref: (8, 128) f32 block of the (16, 128) per-core partial-sum output
    # acc_ref: (8, lanes) f32 partial-sum accumulator (persists across j)
    c = pl.program_id(0)          # core-split axis ("parallel")
    j = pl.program_id(1)          # reduction axis ("arbitrary")
    nj = pl.num_programs(1)
    i = c * nj + j                # flat tile index
    size = scalar_ref[0]
    last_live = scalar_ref[1]
    tile_r, lanes = p_ref.shape

    @pl.when(j == 0)
    def _init():
        acc_ref[...] = jnp.zeros_like(acc_ref)

    def _per_element():
        # min(-log(sigmoid(d)), 100) == min(softplus(-d), 100); softplus written
        # explicitly: 2 EUP transcendentals (exp, log1p) instead of 3.
        d = p_ref[...] - n_ref[...]
        sp = jnp.maximum(-d, 0.0) + jnp.log1p(jnp.exp(-jnp.abs(d)))
        return jnp.minimum(sp, 100.0)

    # Fully-live interior tiles: unmasked.  Partial-reduce each tile down to
    # (8, lanes) with pure VPU vreg adds (leading-dim split reshape, no XLU)
    # so the accumulator read-modify-write only touches 8 sublanes.
    @pl.when(i < last_live)
    def _full_tile():
        per = _per_element()
        acc_ref[...] += per.reshape(tile_r // 8, 8, lanes).sum(axis=0)

    # Last live (possibly partial) tile: mask out flat indices >= size.
    @pl.when(i == last_live)
    def _last_tile():
        per = _per_element()
        row = jax.lax.broadcasted_iota(jnp.int32, (tile_r, lanes), 0)
        col = jax.lax.broadcasted_iota(jnp.int32, (tile_r, lanes), 1)
        flat = (i * tile_r + row) * lanes + col
        per = jnp.where(flat < size, per, 0.0)
        acc_ref[...] += per.reshape(tile_r // 8, 8, lanes).sum(axis=0)

    @pl.when(j == nj - 1)
    def _finalize():
        total = jnp.sum(acc_ref[...])
        # Lane-dense store of this core's partial sum (wrapper reads [0, 0]).
        out_ref[...] = jnp.full(out_ref.shape, total, jnp.float32)


@functools.partial(jax.jit, static_argnames=("lanes", "max_tile_rows"))
def ranknet_bce_loss(inputs, targets, *, lanes=1024, max_tile_rows=512):
    """inputs: (N,) float scores, targets: (N,) with values in {0, 1}."""
    N = inputs.shape[0]
    x = inputs.astype(jnp.float32)

    is_pos = targets == 1
    is_neg = targets == 0
    num_p = jnp.sum(is_pos).astype(jnp.int32)
    num_n = jnp.sum(is_neg).astype(jnp.int32)
    size = jnp.minimum(num_p, num_n)

    # ONE stable multi-operand sort: positives first (key 0), negatives second
    # (key 1), anything else last; relative order inside each class preserved
    # (matches torch boolean-mask indexing).  No argsort + gather pass.
    key = jnp.where(is_pos, 0, jnp.where(is_neg, 1, 2)).astype(jnp.int32)
    _, sorted_x = jax.lax.sort_key_val(key, x, dimension=0, is_stable=True)

    # Sublane/lane-dense padded slab geometry.
    lanes = _round_up(max(int(lanes), 128), 128)
    max_tile_rows = _round_up(max(int(max_tile_rows), 8), 8)
    rows = max(1, _cdiv(N, lanes))
    tile_r = min(max_tile_rows, _round_up(rows, 8))
    num_tiles = _round_up(_cdiv(rows, tile_r), 2)   # even -> 2-way core split
    total_rows = num_tiles * tile_r
    padded_len = total_rows * lanes
    tile_elems = tile_r * lanes

    # One padded buffer; both streams are slices of it.  Positives start at 0,
    # negatives at num_p; everything past `size` is masked in-kernel, so the
    # zero padding is harmless.  (No 2N concatenate, no duplicate pads.)
    buf = jnp.pad(sorted_x, (0, padded_len))                # len N + padded_len
    p_slab = jax.lax.slice(buf, (0,), (padded_len,)).reshape(total_rows, lanes)
    n_slab = jax.lax.dynamic_slice(buf, (num_p,), (padded_len,)).reshape(
        total_rows, lanes)

    last_live = jnp.maximum((size + tile_elems - 1) // tile_elems, 1) - 1
    scalars = jnp.stack([size, last_live]).astype(jnp.int32)

    nj = num_tiles // 2

    def in_map(c, j, s):
        # Clamp dead tiles onto the last live block: a repeated block index
        # makes Pallas skip the HBM->VMEM DMA entirely for those grid steps.
        return (jnp.minimum(c * nj + j, s[1]), 0)

    partial = pl.pallas_call(
        _ranknet_kernel,
        out_shape=jax.ShapeDtypeStruct((16, 128), jnp.float32),
        grid_spec=pltpu.PrefetchScalarGridSpec(
            num_scalar_prefetch=1,
            grid=(2, nj),
            in_specs=[
                pl.BlockSpec((tile_r, lanes), in_map),
                pl.BlockSpec((tile_r, lanes), in_map),
            ],
            out_specs=pl.BlockSpec((8, 128), lambda c, j, s: (c, 0)),
            scratch_shapes=[pltpu.VMEM((8, lanes), jnp.float32)],
        ),
        compiler_params=pltpu.CompilerParams(
            dimension_semantics=("parallel", "arbitrary"),
            vmem_limit_bytes=32 * 1024 * 1024,
        ),
    )(scalars, p_slab, n_slab)

    total = partial[0, 0] + partial[8, 0]          # two per-core partial sums
    denom = jnp.maximum(size, 1).astype(jnp.float32)
    return total / denom                           # == 0.0 when size == 0


def _reference(inputs, targets):
    # Pure numpy reference with the module's semantics.
    x = np.asarray(inputs, dtype=np.float64)
    t = np.asarray(targets)
    p = x[t == 1]
    n = x[t == 0]
    size = min(p.shape[0], n.shape[0])
    if size == 0:
        return 0.0
    d = p[:size] - n[:size]
    s = 1.0 / (1.0 + np.exp(-d))
    per = np.minimum(-np.log(s), 100.0)
    return float(per.mean())


if __name__ == "__main__":
    key = jax.random.PRNGKey(0)
    k1, k2, k3, k4 = jax.random.split(key, 4)

    # Case 1: small, module-like shapes (1-D scores + binary targets).
    n1 = 16
    x1 = jax.random.normal(k1, (n1,), dtype=jnp.float32)
    t1 = jax.random.bernoulli(k2, 0.5, (n1,)).astype(jnp.int32)
    loss1 = jax.block_until_ready(ranknet_bce_loss(x1, t1))
    ref1 = _reference(x1, t1)
    assert abs(float(loss1) - ref1) < 1e-4 * max(1.0, abs(ref1)), (loss1, ref1)

    # Case 2: forces a multi-tile 2-D grid (small tiles) to exercise masking,
    # both per-core partials, pipelining and the dead-tile DMA clamp.
    n2 = 4096
    x2 = jax.random.normal(k3, (n2,), dtype=jnp.float32)
    t2 = jax.random.bernoulli(k4, 0.3, (n2,)).astype(jnp.int32)
    loss2 = jax.block_until_ready(
        ranknet_bce_loss(x2, t2, lanes=128, max_tile_rows=8))
    ref2 = _reference(x2, t2)
    assert abs(float(loss2) - ref2) < 1e-4 * max(1.0, abs(ref2)), (loss2, ref2)

    # Case 3: no negatives -> size == 0 -> loss 0.0.
    t3 = jnp.ones((n1,), jnp.int32)
    loss3 = jax.block_until_ready(ranknet_bce_loss(x1, t3))
    assert float(loss3) == 0.0, loss3

    print("KERNEL_OK")
</pallas_src>

<mosaic_0001>
module attributes {stable_mosaic.version = 11 : i64} {
  func.func @_ranknet_kernel(%arg0: i32, %arg1: i32, %arg2: memref<2xi32, #tpu.memory_space<smem>>, %arg3: memref<8x1024xf32, #tpu.memory_space<vmem>>, %arg4: memref<8x1024xf32, #tpu.memory_space<vmem>>, %arg5: memref<8x128xf32, #tpu.memory_space<vmem>>, %arg6: memref<8x1024xf32, #tpu.memory_space<vmem>>) attributes {dimension_semantics = [#tpu.dimension_semantics<parallel>, #tpu.dimension_semantics<arbitrary>], iteration_bounds = array<i64: 2, 1>, scalar_prefetch = 1 : i64, scratch_operands = 1 : i64, tpu.core_type = #tpu.core_type<tc>, window_params = [{transform_indices = @transform_0, window_bounds = array<i64: 8, 1024>}, {transform_indices = @transform_1, window_bounds = array<i64: 8, 1024>}, {transform_indices = @transform_2, window_bounds = array<i64: 8, 128>}]} {
    %c1_i32 = arith.constant 1 : i32
    %0 = arith.muli %arg0, %c1_i32 : i32
    %1 = arith.addi %0, %arg1 : i32
    %c0 = arith.constant 0 : index
    %2 = memref.load %arg2[%c0] : memref<2xi32, #tpu.memory_space<smem>>
    %c1 = arith.constant 1 : index
    %3 = memref.load %arg2[%c1] : memref<2xi32, #tpu.memory_space<smem>>
    %c0_i32 = arith.constant 0 : i32
    %4 = arith.cmpi eq, %arg1, %c0_i32 : i32
    %5 = arith.extui %4 : i1 to i32
    %c0_i32_0 = arith.constant 0 : i32
    %6 = arith.cmpi ne, %5, %c0_i32_0 : i32
    scf.if %6 {
      %cst = arith.constant 0.000000e+00 : f32
      %16 = vector.broadcast %cst : f32 to vector<8x1024xf32>
      %c0_5 = arith.constant 0 : index
      %c0_6 = arith.constant 0 : index
      %17 = vector.load %arg6[%c0_5, %c0_6] : memref<8x1024xf32, #tpu.memory_space<vmem>>, vector<8x1024xf32>
      tpu.vector_store %arg6[%c0_5, %c0_6], %16 {strides = array<i32>} : memref<8x1024xf32, #tpu.memory_space<vmem>>, vector<8x1024xf32>,
    } else {
    }
    %7 = arith.cmpi slt, %1, %3 : i32
    %8 = arith.extui %7 : i1 to i32
    %c0_i32_1 = arith.constant 0 : i32
    %9 = arith.cmpi ne, %8, %c0_i32_1 : i32
    scf.if %9 {
      %c0_5 = arith.constant 0 : index
      %c0_6 = arith.constant 0 : index
      %16 = vector.load %arg3[%c0_5, %c0_6] : memref<8x1024xf32, #tpu.memory_space<vmem>>, vector<8x1024xf32>
      %c0_7 = arith.constant 0 : index
      %c0_8 = arith.constant 0 : index
      %17 = vector.load %arg4[%c0_7, %c0_8] : memref<8x1024xf32, #tpu.memory_space<vmem>>, vector<8x1024xf32>
      %18 = arith.subf %16, %17 : vector<8x1024xf32>
      %cst = arith.constant 0.000000e+00 : f32
      %19 = vector.broadcast %cst : f32 to vector<8x1024xf32>
      %20 = arith.subf %19, %18 : vector<8x1024xf32>
      %cst_9 = arith.constant 0.000000e+00 : f32
      %21 = vector.broadcast %cst_9 : f32 to vector<8x1024xf32>
      %22 = arith.maximumf %20, %21 : vector<8x1024xf32>
      %23 = math.absf %18 : vector<8x1024xf32>
      %cst_10 = arith.constant 0.000000e+00 : f32
      %24 = vector.broadcast %cst_10 : f32 to vector<8x1024xf32>
      %25 = arith.subf %24, %23 : vector<8x1024xf32>
      %26 = math.exp %25 : vector<8x1024xf32>
      %27 = math.log1p %26 : vector<8x1024xf32>
      %28 = arith.addf %22, %27 : vector<8x1024xf32>
      %cst_11 = arith.constant 1.000000e+02 : f32
      %29 = vector.broadcast %cst_11 : f32 to vector<8x1024xf32>
      %30 = arith.minimumf %28, %29 : vector<8x1024xf32>
      %c0_12 = arith.constant 0 : index
      %c0_13 = arith.constant 0 : index
      %31 = vector.load %arg6[%c0_12, %c0_13] : memref<8x1024xf32, #tpu.memory_space<vmem>>, vector<8x1024xf32>
      %32 = vector.shape_cast %30 : vector<8x1024xf32> to vector<1x8x1024xf32>
      %cst_14 = arith.constant dense<0.000000e+00> : vector<8x1024xf32>
      %33 = vector.multi_reduction <add>, %32, %cst_14 [0] : vector<1x8x1024xf32> to vector<8x1024xf32>
      %34 = arith.addf %31, %33 : vector<8x1024xf32>
      %c0_15 = arith.constant 0 : index
      %c0_16 = arith.constant 0 : index
      %35 = vector.load %arg6[%c0_15, %c0_16] : memref<8x1024xf32, #tpu.memory_space<vmem>>, vector<8x1024xf32>
      tpu.vector_store %arg6[%c0_15, %c0_16], %34 {strides = array<i32>} : memref<8x1024xf32, #tpu.memory_space<vmem>>, vector<8x1024xf32>,
    } else {
    }
    %10 = arith.cmpi eq, %1, %3 : i32
    %11 = arith.extui %10 : i1 to i32
    %c0_i32_2 = arith.constant 0 : i32
    %12 = arith.cmpi ne, %11, %c0_i32_2 : i32
    scf.if %12 {
      %c0_5 = arith.constant 0 : index
      %c0_6 = arith.constant 0 : index
      %16 = vector.load %arg3[%c0_5, %c0_6] : memref<8x1024xf32, #tpu.memory_space<vmem>>, vector<8x1024xf32>
      %c0_7 = arith.constant 0 : index
      %c0_8 = arith.constant 0 : index
      %17 = vector.load %arg4[%c0_7, %c0_8] : memref<8x1024xf32, #tpu.memory_space<vmem>>, vector<8x1024xf32>
      %18 = arith.subf %16, %17 : vector<8x1024xf32>
      %cst = arith.constant 0.000000e+00 : f32
      %19 = vector.broadcast %cst : f32 to vector<8x1024xf32>
      %20 = arith.subf %19, %18 : vector<8x1024xf32>
      %cst_9 = arith.constant 0.000000e+00 : f32
      %21 = vector.broadcast %cst_9 : f32 to vector<8x1024xf32>
      %22 = arith.maximumf %20, %21 : vector<8x1024xf32>
      %23 = math.absf %18 : vector<8x1024xf32>
      %cst_10 = arith.constant 0.000000e+00 : f32
      %24 = vector.broadcast %cst_10 : f32 to vector<8x1024xf32>
      %25 = arith.subf %24, %23 : vector<8x1024xf32>
      %26 = math.exp %25 : vector<8x1024xf32>
      %27 = math.log1p %26 : vector<8x1024xf32>
      %28 = arith.addf %22, %27 : vector<8x1024xf32>
      %cst_11 = arith.constant 1.000000e+02 : f32
      %29 = vector.broadcast %cst_11 : f32 to vector<8x1024xf32>
      %30 = arith.minimumf %28, %29 : vector<8x1024xf32>
      %31 = tpu.iota {dimensions = array<i32: 0>} : vector<8x1024xi32>
      %32 = tpu.iota {dimensions = array<i32: 1>} : vector<8x1024xi32>
      %c8_i32 = arith.constant 8 : i32
      %33 = arith.muli %1, %c8_i32 : i32
      %34 = vector.broadcast %33 : i32 to vector<8x1024xi32>
      %35 = arith.addi %34, %31 : vector<8x1024xi32>
      %c1024_i32 = arith.constant 1024 : i32
      %36 = vector.broadcast %c1024_i32 : i32 to vector<8x1024xi32>
      %37 = arith.muli %35, %36 : vector<8x1024xi32>
      %38 = arith.addi %37, %32 : vector<8x1024xi32>
      %39 = vector.broadcast %2 : i32 to vector<8x1024xi32>
      %40 = arith.cmpi slt, %38, %39 : vector<8x1024xi32>
      %cst_12 = arith.constant 0.000000e+00 : f32
      %41 = vector.broadcast %cst_12 : f32 to vector<8x1024xf32>
      %42 = arith.select %40, %30, %41 : vector<8x1024xi1>, vector<8x1024xf32>
      %c0_13 = arith.constant 0 : index
      %c0_14 = arith.constant 0 : index
      %43 = vector.load %arg6[%c0_13, %c0_14] : memref<8x1024xf32, #tpu.memory_space<vmem>>, vector<8x1024xf32>
      %44 = vector.shape_cast %42 : vector<8x1024xf32> to vector<1x8x1024xf32>
      %cst_15 = arith.constant dense<0.000000e+00> : vector<8x1024xf32>
      %45 = vector.multi_reduction <add>, %44, %cst_15 [0] : vector<1x8x1024xf32> to vector<8x1024xf32>
      %46 = arith.addf %43, %45 : vector<8x1024xf32>
      %c0_16 = arith.constant 0 : index
      %c0_17 = arith.constant 0 : index
      %47 = vector.load %arg6[%c0_16, %c0_17] : memref<8x1024xf32, #tpu.memory_space<vmem>>, vector<8x1024xf32>
      tpu.vector_store %arg6[%c0_16, %c0_17], %46 {strides = array<i32>} : memref<8x1024xf32, #tpu.memory_space<vmem>>, vector<8x1024xf32>,
    } else {
    }
    %c0_i32_3 = arith.constant 0 : i32
    %13 = arith.cmpi eq, %arg1, %c0_i32_3 : i32
    %14 = arith.extui %13 : i1 to i32
    %c0_i32_4 = arith.constant 0 : i32
    %15 = arith.cmpi ne, %14, %c0_i32_4 : i32
    scf.if %15 {
      %c0_5 = arith.constant 0 : index
      %c0_6 = arith.constant 0 : index
      %16 = vector.load %arg6[%c0_5, %c0_6] : memref<8x1024xf32, #tpu.memory_space<vmem>>, vector<8x1024xf32>
      %17 = vector.shape_cast %16 : vector<8x1024xf32> to vector<1x8x1024xf32>
      %cst = arith.constant dense<0.000000e+00> : vector<1xf32>
      %18 = vector.multi_reduction <add>, %17, %cst [1, 2] : vector<1x8x1024xf32> to vector<1xf32>
      %19 = vector.shape_cast %18 : vector<1xf32> to vector<1x1x1xf32>
      %20 = vector.extract %19[0, 0, 0] : f32 from vector<1x1x1xf32>
      %21 = vector.broadcast %20 : f32 to vector<8x128xf32>
      %c0_7 = arith.constant 0 : index
      %c0_8 = arith.constant 0 : index
      %22 = vector.load %arg5[%c0_7, %c0_8] : memref<8x128xf32, #tpu.memory_space<vmem>>, vector<8x128xf32>
      tpu.vector_store %arg5[%c0_7, %c0_8], %21 {strides = array<i32>} : memref<8x128xf32, #tpu.memory_space<vmem>>, vector<8x128xf32>,
    } else {
    }
    return
  }
  func.func @transform_0(%arg0: i32, %arg1: i32, %arg2: memref<2xi32, #tpu.memory_space<smem>>) -> (i32, i32) {
    %c1_i32 = arith.constant 1 : i32
    %0 = arith.muli %arg0, %c1_i32 : i32
    %1 = arith.addi %0, %arg1 : i32
    %c1 = arith.constant 1 : index
    %2 = memref.load %arg2[%c1] : memref<2xi32, #tpu.memory_space<smem>>
    %3 = arith.minsi %1, %2 : i32
    %c0_i32 = arith.constant 0 : i32
    %c0_i32_0 = arith.constant 0 : i32
    return %3, %c0_i32 : i32, i32
  }
  func.func @transform_1(%arg0: i32, %arg1: i32, %arg2: memref<2xi32, #tpu.memory_space<smem>>) -> (i32, i32) {
    %c1_i32 = arith.constant 1 : i32
    %0 = arith.muli %arg0, %c1_i32 : i32
    %1 = arith.addi %0, %arg1 : i32
    %c1 = arith.constant 1 : index
    %2 = memref.load %arg2[%c1] : memref<2xi32, #tpu.memory_space<smem>>
    %3 = arith.minsi %1, %2 : i32
    %c0_i32 = arith.constant 0 : i32
    %c0_i32_0 = arith.constant 0 : i32
    return %3, %c0_i32 : i32, i32
  }
  func.func @transform_2(%arg0: i32, %arg1: i32, %arg2: memref<2xi32, #tpu.memory_space<smem>>) -> (i32, i32) {
    %c0_i32 = arith.constant 0 : i32
    %c0_i32_0 = arith.constant 0 : i32
    return %arg0, %c0_i32 : i32, i32
  }
}

</mosaic_0001>

<llo_original>
// kernel: ranknet_bce_loss.1
$region0: #{ranknet_bce_loss.1}
  #allocation0 [shape = 'u32[]', space=smem, size = 0x4, offset = 0x4, fixed_abs, tag = 'smem constant byte address 0x4 - core index']
  #allocation1 [shape = 'u32[144,128]{1,0:T(1,128)}', space=vmem, size = 0x12000, scoped, tag = 'internal scratch']
  #allocation2 [shape = 'f32[8,1024]{1,0:T(8,128)}', space=vmem, size = 0x8000, scoped, tag = 'scratch operand']
  #allocation3 [shape = 's32[1]{0}', space=sflag, size = 0x4, scoped, tag = 'scoped memory for ranknet_bce_loss.1']
  #allocation4 [shape = 'u8[512]{0}', space=smem, size = 0x200, scoped, tag = 'prefetched SMEM operand 0']
  %s0 = inlined_call_operand.vmem [shape: s32[2], index: 0, kind: input, shape index: {}]
  %s1 = inlined_call_operand.vmem [shape: f32[16,1024], index: 1, kind: input, shape index: {}]
  %s2 = inlined_call_operand.vmem [shape: f32[16,1024], index: 2, kind: input, shape index: {}]
  %s3 = inlined_call_operand.vmem [shape: f32[16,128], index: 3, kind: output, shape index: {}]
  %s4 = sld [smem:[#allocation0]]
  $region57: #{ranknet_bce_loss.1} parent=0
    _
  %s6 = ssub.s32 1, %s4
  %s7 = scalar_select 0, %s6, %s4
  %s8 = sshll.u32 %s0, 4
  %s9 = int_to_ptr.vmem [resolvable:$true] %s8
  %11 = dma.vmem_to_smem %s9, 16, [#allocation4], [#allocation3]
  %12 = dma.done [#allocation3], 16
  %13 = sfence
  loop: start=0, step=1, limit=4
  $region2: #{ranknet_bce_loss.1} parent=0 // loop_pre_header
    _
  $region3: #{ranknet_bce_loss.1} parent=0 // loop_header
    %s15 = sphi 0, %s19
    %p16 = scmp.ge.s32.totalorder %s15, 4
    %s22 = sphi 0, %s34
    %s23 = sphi 0, %s30
    %s24 = sphi 0, %s22
    %s25 = sphi 0, %s23
    %s26 = sphi 0, %s24
    %s27 = sphi 0, %s25
    %s45 = sphi 0, %s47
    %s48 = sphi 0, %s45
    %s49 = sphi 0, %s48
    %s65 = sphi 0, %s49
    %s79 = sphi 0, %s81
    %s82 = sphi 0, %s79
    %s83 = sphi 0, %s82
    %s99 = sphi 0, %s83
    %s105 = sphi 0, %s107
    %s108 = sphi 0, %s105
    %s109 = sphi 0, %s108
    %s125 = sphi 0, %s109
  $region4: #{ranknet_bce_loss.1} parent=0 // loop_header_branch
    %18 = sbr.rel (%p16) target = $region8
  $region5: #{ranknet_bce_loss.1} parent=0 // loop_body
    %s20 = ssub.s32 %s15, 1
    %s21 = ssub.s32 %s15, 2
    %s28 = sadd.s32 1, %s23
    %p29 = scmp.ge.s32.totalorder %s28, 1
    %s30 = scalar_select %p29, 0, %s28
    %s31 = sadd.s32 1, %s22
    %s32 = scalar_select %p29, %s31, %s22
    %p33 = scmp.ge.s32.totalorder %s32, 2
    %s34 = scalar_select %p33, 0, %s32
    %s35 = sadd.s32 %s22, %s23
    %s36 = sld [smem:[#allocation4 + $0x1]]
    %p37 = scmp.lt.s32.totalorder %s35, %s36
    %s38 = scalar_select %p37, %s35, %s36
    %s39 = sadd.s32 %s34, %s30
    %s40 = sld [smem:[#allocation4 + $0x1]]
    %p41 = scmp.lt.s32.totalorder %s39, %s40
    %s42 = scalar_select %p41, %s39, %s40
    %s43 = ssub.s32 %s38, %s42
    %p44 = scmp.eq.s32.totalorder %s43, 0
    %s46 = sadd.s32 %s45, 1
    %s47 = scalar_select %p44, %s45, %s46
    %p50 = pneg %p44
    %p51 = scmp.eq.s32.totalorder %s15, 1
    %p52 = por %p50, %p51
    %p53 = scmp.ne.s32.totalorder %s45, %s48
    %p54 = scmp.eq.s32.totalorder %s15, 0
    %p55 = por %p53, %p54
    %p56 = scmp.ne.s32.totalorder %s45, %s48
    %p57 = scmp.eq.s32.totalorder %s20, 1
    %p58 = por %p56, %p57
    %p59 = scmp.ne.s32.totalorder %s48, %s49
    %p60 = scmp.eq.s32.totalorder %s20, 0
    %p61 = por %p59, %p60
    %p62 = scmp.ne.s32.totalorder %s48, %s49
    %p63 = scmp.eq.s32.totalorder %s21, 1
    %p64 = por %p62, %p63
    %p66 = scmp.ne.s32.totalorder %s49, %s65
    %p67 = scmp.eq.s32.totalorder %s21, 0
    %p68 = por %p66, %p67
    %s69 = sadd.s32 %s22, %s23
    %s70 = sld [smem:[#allocation4 + $0x1]]
    %p71 = scmp.lt.s32.totalorder %s69, %s70
    %s72 = scalar_select %p71, %s69, %s70
    %s73 = sadd.s32 %s34, %s30
    %s74 = sld [smem:[#allocation4 + $0x1]]
    %p75 = scmp.lt.s32.totalorder %s73, %s74
    %s76 = scalar_select %p75, %s73, %s74
    %s77 = ssub.s32 %s72, %s76
    %p78 = scmp.eq.s32.totalorder %s77, 0
    %s80 = sadd.s32 %s79, 1
    %s81 = scalar_select %p78, %s79, %s80
    %p84 = pneg %p78
    %p85 = scmp.eq.s32.totalorder %s15, 1
    %p86 = por %p84, %p85
    %p87 = scmp.ne.s32.totalorder %s79, %s82
    %p88 = scmp.eq.s32.totalorder %s15, 0
    %p89 = por %p87, %p88
    %p90 = scmp.ne.s32.totalorder %s79, %s82
    %p91 = scmp.eq.s32.totalorder %s20, 1
    %p92 = por %p90, %p91
    %p93 = scmp.ne.s32.totalorder %s82, %s83
    %p94 = scmp.eq.s32.totalorder %s20, 0
    %p95 = por %p93, %p94
    %p96 = scmp.ne.s32.totalorder %s82, %s83
    %p97 = scmp.eq.s32.totalorder %s21, 1
    %p98 = por %p96, %p97
    %p100 = scmp.ne.s32.totalorder %s83, %s99
    %p101 = scmp.eq.s32.totalorder %s21, 0
    %p102 = por %p100, %p101
    %s103 = ssub.s32 %s22, %s34
    %p104 = scmp.eq.s32.totalorder %s103, 0
    %s106 = sadd.s32 %s105, 1
    %s107 = scalar_select %p104, %s105, %s106
    %p110 = pneg %p104
    %p111 = scmp.eq.s32.totalorder %s15, 1
    %p112 = por %p110, %p111
    %p113 = scmp.ne.s32.totalorder %s105, %s108
    %p114 = scmp.eq.s32.totalorder %s15, 0
    %p115 = por %p113, %p114
    %p116 = scmp.ne.s32.totalorder %s105, %s108
    %p117 = scmp.eq.s32.totalorder %s20, 1
    %p118 = por %p116, %p117
    %p119 = scmp.ne.s32.totalorder %s108, %s109
    %p120 = scmp.eq.s32.totalorder %s20, 0
    %p121 = por %p119, %p120
    %p122 = scmp.ne.s32.totalorder %s108, %s109
    %p123 = scmp.eq.s32.totalorder %s21, 1
    %p124 = por %p122, %p123
    %p126 = scmp.ne.s32.totalorder %s109, %s125
    %p127 = scmp.eq.s32.totalorder %s21, 0
    %p128 = por %p126, %p127
    %p129 = scmp.le.s32.totalorder 1, %s15
    %p130 = scmp.lt.s32.totalorder %s15, 3
    %p131 = pnand %p129, %p130
    %p132 = pneg %p131
    // Predicated region
    $region9: #{ranknet_bce_loss.1} parent=5 // pred_check
      _
    $region10: #{ranknet_bce_loss.1} parent=5 // pred_check_branch
      %134 = sbr.rel (%p131) target = $region12
    $region11: #{ranknet_bce_loss.1} parent=5 // pred_region
      %s135 = ssub.s32 %s15, 1
    $region12: #{ranknet_bce_loss.1} parent=5 // pred_fallthru
      _
    %p136 = scmp.lt.s32.totalorder %s15, 2
    // Predicated region
    $region13: #{ranknet_bce_loss.1} parent=5 // pred_check
      %p137 = pneg %p136
    $region14: #{ranknet_bce_loss.1} parent=5 // pred_check_branch
      %139 = sbr.rel (%p137) target = $region16
    $region15: #{ranknet_bce_loss.1} parent=5 // pred_region
      // Predicated region
      $region17: #{ranknet_bce_loss.1} parent=15 // pred_check
        %p140 = pneg %p55
      $region18: #{ranknet_bce_loss.1} parent=15 // pred_check_branch
        %142 = sbr.rel (%p140) target = $region20
      $region19: #{ranknet_bce_loss.1} parent=15 // pred_region
        %s143 = sadd.s32 %s22, %s23
        %s144 = sld [smem:[#allocation4 + $0x1]]
        %p145 = scmp.lt.s32.totalorder %s143, %s144
        %s146 = scalar_select %p145, %s143, %s144
        %p147 = scmp.lt.s32.totalorder %s146, 1
        %s148 = scalar_select %p147, %s146, 1
        %s149 = smul.addr %s148, 8
        %s150 = smul.addr %s149, 8
        %s151 = scalar_lea.vmem %s1, %s150
        %s152 = sadd.s32 %s22, %s23
        %s153 = sld [smem:[#allocation4 + $0x1]]
        %p154 = scmp.lt.s32.totalorder %s152, %s153
        %s155 = scalar_select %p154, %s152, %s153
      $region20: #{ranknet_bce_loss.1} parent=15 // pred_fallthru
        _
      // Predicated region
      $region21: #{ranknet_bce_loss.1} parent=15 // pred_check
        %p156 = pneg %p89
      $region22: #{ranknet_bce_loss.1} parent=15 // pred_check_branch
        %158 = sbr.rel (%p156) target = $region24
      $region23: #{ranknet_bce_loss.1} parent=15 // pred_region
        %s159 = sadd.s32 %s22, %s23
        %s160 = sld [smem:[#allocation4 + $0x1]]
        %p161 = scmp.lt.s32.totalorder %s159, %s160
        %s162 = scalar_select %p161, %s159, %s160
        %p163 = scmp.lt.s32.totalorder %s162, 1
        %s164 = scalar_select %p163, %s162, 1
        %s165 = smul.addr %s164, 8
        %s166 = smul.addr %s165, 8
        %s167 = scalar_lea.vmem %s2, %s166
        %s168 = sadd.s32 %s22, %s23
        %s169 = sld [smem:[#allocation4 + $0x1]]
        %p170 = scmp.lt.s32.totalorder %s168, %s169
        %s171 = scalar_select %p170, %s168, %s169
      $region24: #{ranknet_bce_loss.1} parent=15 // pred_fallthru
        _
    $region16: #{ranknet_bce_loss.1} parent=5 // pred_fallthru
      _
    %p172 = scmp.le.s32.totalorder 1, %s15
    %p173 = scmp.lt.s32.totalorder %s15, 3
    %p174 = pnand %p172, %p173
    %p175 = pneg %p174
    // Predicated region
    $region25: #{ranknet_bce_loss.1} parent=5 // pred_check
      _
    $region26: #{ranknet_bce_loss.1} parent=5 // pred_check_branch
      %177 = sbr.rel (%p174) target = $region28
    $region27: #{ranknet_bce_loss.1} parent=5 // pred_region
      %s178 = ssub.s32 %s15, 1
      %s179 = sadd.s32 %s24, %s25
      %s180 = sld [smem:[#allocation4 + $0x1]]
      %p181 = scmp.lt.s32.totalorder %s179, %s180
      %s182 = scalar_select %p181, %s179, %s180
      %p183 = scmp.lt.s32.totalorder %s182, 1
      %s184 = scalar_select %p183, %s182, 1
      %s185 = smul.addr %s184, 8
      %s186 = smul.addr %s185, 8
      %s187 = scalar_lea.vmem %s1, %s186
      %p188 = pneg %p61
      %p189 = pneg %p58
      %s190 = sadd.s32 %s24, %s25
      %s191 = sld [smem:[#allocation4 + $0x1]]
      %p192 = scmp.lt.s32.totalorder %s190, %s191
      %s193 = scalar_select %p192, %s190, %s191
      %p194 = scmp.lt.s32.totalorder %s193, 1
      %s195 = scalar_select %p194, %s193, 1
      %s196 = smul.addr %s195, 8
      %s197 = smul.addr %s196, 8
      %s198 = scalar_lea.vmem %s2, %s197
      %p199 = pneg %p95
      %p200 = pneg %p92
      %p201 = pneg %p121
      %p202 = pneg %p118
      %p203 = scmp.lt.s32.totalorder %s24, 1
      %s204 = scalar_select %p203, %s24, 1
      %s205 = smul.addr %s204, 8
      %s206 = scalar_lea.vmem %s3, %s205
      %s207 = sadd.s32 %s24, %s25
      %s208 = sld [smem:[#allocation4 + $0x1]]
      %p209 = scmp.lt.s32.totalorder %s207, %s208
      %s210 = scalar_select %p209, %s207, %s208
      %p211 = scmp.lt.s32.totalorder %s210, 1
      %s212 = scalar_select %p211, %s210, 1
      %s213 = smul.addr %s212, 8
      %s214 = smul.addr %s213, 8
      %s215 = scalar_lea.vmem %s1, %s214
      %s216 = sadd.s32 %s24, %s25
      %s217 = sld [smem:[#allocation4 + $0x1]]
      %p218 = scmp.lt.s32.totalorder %s216, %s217
      %s219 = scalar_select %p218, %s216, %s217
      %s220 = sadd.s32 %s24, %s25
      %s221 = sld [smem:[#allocation4 + $0x1]]
      %p222 = scmp.lt.s32.totalorder %s220, %s221
      %s223 = scalar_select %p222, %s220, %s221
      %p224 = scmp.lt.s32.totalorder %s223, 1
      %s225 = scalar_select %p224, %s223, 1
      %s226 = smul.addr %s225, 8
      %s227 = smul.addr %s226, 8
      %s228 = scalar_lea.vmem %s2, %s227
      %s229 = sadd.s32 %s24, %s25
      %s230 = sld [smem:[#allocation4 + $0x1]]
      %p231 = scmp.lt.s32.totalorder %s229, %s230
      %s232 = scalar_select %p231, %s229, %s230
      %p233 = scmp.lt.s32.totalorder %s24, 1
      %s234 = scalar_select %p233, %s24, 1
      %s235 = smul.addr %s234, 8
      %s236 = scalar_lea.vmem %s3, %s235
      %s237 = sadd.s32 %s24, %s25
      %s238 = sld [smem:[#allocation4]]
      %s239 = sld [smem:[#allocation4 + $0x1]]
      %p240 = scmp.eq.s32.totalorder %s25, 0
      // Predicated region
      $region29: #{ranknet_bce_loss.1} parent=27 // pred_check
        %p241 = pneg %p240
      $region30: #{ranknet_bce_loss.1} parent=27 // pred_check_branch
        %243 = sbr.rel (%p241) target = $region32
      $region31: #{ranknet_bce_loss.1} parent=27 // pred_region
        %244 = vst [vmem:[#allocation2] sm:$0xff] 0.0
        %245 = vst [vmem:[#allocation2 + $0x8] sm:$0xff] 0.0
        %246 = vst [vmem:[#allocation2 + $0x10] sm:$0xff] 0.0
        %247 = vst [vmem:[#allocation2 + $0x18] sm:$0xff] 0.0
        %248 = vst [vmem:[#allocation2 + $0x20] sm:$0xff] 0.0
        %249 = vst [vmem:[#allocation2 + $0x28] sm:$0xff] 0.0
        %250 = vst [vmem:[#allocation2 + $0x30] sm:$0xff] 0.0
        %251 = vst [vmem:[#allocation2 + $0x38] sm:$0xff] 0.0
      $region32: #{ranknet_bce_loss.1} parent=27 // pred_fallthru
        _
      %p252 = scmp.lt.s32.totalorder %s237, %s239
      // Predicated region
      $region33: #{ranknet_bce_loss.1} parent=27 // pred_check
        %p253 = pneg %p252
      $region34: #{ranknet_bce_loss.1} parent=27 // pred_check_branch
        %255 = sbr.rel (%p253) target = $region36
      $region35: #{ranknet_bce_loss.1} parent=27 // pred_region
        %v256 = vld [vmem:[%s215] sm:$0xff]
        %v257 = vld [vmem:[%s215 + $0x8] sm:$0xff]
        %v258 = vld [vmem:[%s215 + $0x10] sm:$0xff]
        %v259 = vld [vmem:[%s215 + $0x18] sm:$0xff]
        %v260 = vld [vmem:[%s215 + $0x20] sm:$0xff]
        %v261 = vld [vmem:[%s215 + $0x28] sm:$0xff]
        %v262 = vld [vmem:[%s215 + $0x30] sm:$0xff]
        %v263 = vld [vmem:[%s215 + $0x38] sm:$0xff]
        %v264 = vld [vmem:[%s228] sm:$0xff]
        %v265 = vld [vmem:[%s228 + $0x8] sm:$0xff]
        %v266 = vld [vmem:[%s228 + $0x10] sm:$0xff]
        %v267 = vld [vmem:[%s228 + $0x18] sm:$0xff]
        %v268 = vld [vmem:[%s228 + $0x20] sm:$0xff]
        %v269 = vld [vmem:[%s228 + $0x28] sm:$0xff]
        %v270 = vld [vmem:[%s228 + $0x30] sm:$0xff]
        %v271 = vld [vmem:[%s228 + $0x38] sm:$0xff]
        %v272 = vsub.f32 %v256, %v264
        %v273 = vsub.f32 %v257, %v265
        %v274 = vsub.f32 %v258, %v266
        %v275 = vsub.f32 %v259, %v267
        %v276 = vsub.f32 %v260, %v268
        %v277 = vsub.f32 %v261, %v269
        %v278 = vsub.f32 %v262, %v270
        %v279 = vsub.f32 %v263, %v271
        %v280 = vsub.f32 0.0, %v272
        %v281 = vsub.f32 0.0, %v273
        %v282 = vsub.f32 0.0, %v274
        %v283 = vsub.f32 0.0, %v275
        %v284 = vsub.f32 0.0, %v276
        %v285 = vsub.f32 0.0, %v277
        %v286 = vsub.f32 0.0, %v278
        %v287 = vsub.f32 0.0, %v279
        %v288 = vmax.f32 %v280, 0.0
        %v289 = vmax.f32 %v281, 0.0
        %v290 = vmax.f32 %v282, 0.0
        %v291 = vmax.f32 %v283, 0.0
        %v292 = vmax.f32 %v284, 0.0
        %v293 = vmax.f32 %v285, 0.0
        %v294 = vmax.f32 %v286, 0.0
        %v295 = vmax.f32 %v287, 0.0
        %v296 = vand.u32 2147483647, %v272
        %v297 = vand.u32 2147483647, %v273
        %v298 = vand.u32 2147483647, %v274
        %v299 = vand.u32 2147483647, %v275
        %v300 = vand.u32 2147483647, %v276
        %v301 = vand.u32 2147483647, %v277
        %v302 = vand.u32 2147483647, %v278
        %v303 = vand.u32 2147483647, %v279
        %v304 = vsub.f32 0.0, %v296
        %v305 = vsub.f32 0.0, %v297
        %v306 = vsub.f32 0.0, %v298
        %v307 = vsub.f32 0.0, %v299
        %v308 = vsub.f32 0.0, %v300
        %v309 = vsub.f32 0.0, %v301
        %v310 = vsub.f32 0.0, %v302
        %v311 = vsub.f32 0.0, %v303
        %v312 = vmul.f32 %v304, 1.442695
        %v313 = vpow.pop %v312
        %v314 = vmul.f32 %v305, 1.442695
        %v315 = vpow.pop %v314
        %v316 = vmul.f32 %v306, 1.442695
        %v317 = vpow.pop %v316
        %v318 = vmul.f32 %v307, 1.442695
        %v319 = vpow.pop %v318
        %v320 = vmul.f32 %v308, 1.442695
        %v321 = vpow.pop %v320
        %v322 = vmul.f32 %v309, 1.442695
        %v323 = vpow.pop %v322
        %v324 = vmul.f32 %v310, 1.442695
        %v325 = vpow.pop %v324
        %v326 = vmul.f32 %v311, 1.442695
        %v327 = vpow.pop %v326
        %v328 = vadd.f32 %v313, 1.0
        %v329 = vlog2.pop %v328
        %v330 = vmul.f32 %v329, 0.6931472
        %v331 = vmul.f32 -0.5, %v313
        %v332 = vadd.f32 %v331, 1.0
        %v333 = vmul.f32 %v332, %v313
        %v334 = vand.u32 2147483647, %v313
        %vm335 = vcmp.lt.f32.partialorder %v334, 0.0004427343
        %v336 = vsel %vm335, %v333, %v330
        %v337 = vadd.f32 %v315, 1.0
        %v338 = vlog2.pop %v337
        %v339 = vmul.f32 %v338, 0.6931472
        %v340 = vmul.f32 -0.5, %v315
        %v341 = vadd.f32 %v340, 1.0
        %v342 = vmul.f32 %v341, %v315
        %v343 = vand.u32 2147483647, %v315
        %vm344 = vcmp.lt.f32.partialorder %v343, 0.0004427343
        %v345 = vsel %vm344, %v342, %v339
        %v346 = vadd.f32 %v317, 1.0
        %v347 = vlog2.pop %v346
        %v348 = vmul.f32 %v347, 0.6931472
        %v349 = vmul.f32 -0.5, %v317
        %v350 = vadd.f32 %v349, 1.0
        %v351 = vmul.f32 %v350, %v317
        %v352 = vand.u32 2147483647, %v317
        %vm353 = vcmp.lt.f32.partialorder %v352, 0.0004427343
        %v354 = vsel %vm353, %v351, %v348
        %v355 = vadd.f32 %v319, 1.0
        %v356 = vlog2.pop %v355
        %v357 = vmul.f32 %v356, 0.6931472
        %v358 = vmul.f32 -0.5, %v319
        %v359 = vadd.f32 %v358, 1.0
        %v360 = vmul.f32 %v359, %v319
        %v361 = vand.u32 2147483647, %v319
        %vm362 = vcmp.lt.f32.partialorder %v361, 0.0004427343
        %v363 = vsel %vm362, %v360, %v357
        %v364 = vadd.f32 %v321, 1.0
        %v365 = vlog2.pop %v364
        %v366 = vmul.f32 %v365, 0.6931472
        %v367 = vmul.f32 -0.5, %v321
        %v368 = vadd.f32 %v367, 1.0
        %v369 = vmul.f32 %v368, %v321
        %v370 = vand.u32 2147483647, %v321
        %vm371 = vcmp.lt.f32.partialorder %v370, 0.0004427343
        %v372 = vsel %vm371, %v369, %v366
        %v373 = vadd.f32 %v323, 1.0
        %v374 = vlog2.pop %v373
        %v375 = vmul.f32 %v374, 0.6931472
        %v376 = vmul.f32 -0.5, %v323
        %v377 = vadd.f32 %v376, 1.0
        %v378 = vmul.f32 %v377, %v323
        %v379 = vand.u32 2147483647, %v323
        %vm380 = vcmp.lt.f32.partialorder %v379, 0.0004427343
        %v381 = vsel %vm380, %v378, %v375
        %v382 = vadd.f32 %v325, 1.0
        %v383 = vlog2.pop %v382
        %v384 = vmul.f32 %v383, 0.6931472
        %v385 = vmul.f32 -0.5, %v325
        %v386 = vadd.f32 %v385, 1.0
        %v387 = vmul.f32 %v386, %v325
        %v388 = vand.u32 2147483647, %v325
        %vm389 = vcmp.lt.f32.partialorder %v388, 0.0004427343
        %v390 = vsel %vm389, %v387, %v384
        %v391 = vadd.f32 %v327, 1.0
        %v392 = vlog2.pop %v391
        %v393 = vmul.f32 %v392, 0.6931472
        %v394 = vmul.f32 -0.5, %v327
        %v395 = vadd.f32 %v394, 1.0
        %v396 = vmul.f32 %v395, %v327
        %v397 = vand.u32 2147483647, %v327
        %vm398 = vcmp.lt.f32.partialorder %v397, 0.0004427343
        %v399 = vsel %vm398, %v396, %v393
        %v400 = vadd.f32 %v288, %v336
        %v401 = vadd.f32 %v289, %v345
        %v402 = vadd.f32 %v290, %v354
        %v403 = vadd.f32 %v291, %v363
        %v404 = vadd.f32 %v292, %v372
        %v405 = vadd.f32 %v293, %v381
        %v406 = vadd.f32 %v294, %v390
        %v407 = vadd.f32 %v295, %v399
        %v408 = vmin.f32 %v400, 100.0
        %v409 = vmin.f32 %v401, 100.0
        %v410 = vmin.f32 %v402, 100.0
        %v411 = vmin.f32 %v403, 100.0
        %v412 = vmin.f32 %v404, 100.0
        %v413 = vmin.f32 %v405, 100.0
        %v414 = vmin.f32 %v406, 100.0
        %v415 = vmin.f32 %v407, 100.0
        %v416 = vld [vmem:[#allocation2] sm:$0xff]
        %v417 = vld [vmem:[#allocation2 + $0x8] sm:$0xff]
        %v418 = vld [vmem:[#allocation2 + $0x10] sm:$0xff]
        %v419 = vld [vmem:[#allocation2 + $0x18] sm:$0xff]
        %v420 = vld [vmem:[#allocation2 + $0x20] sm:$0xff]
        %v421 = vld [vmem:[#allocation2 + $0x28] sm:$0xff]
        %v422 = vld [vmem:[#allocation2 + $0x30] sm:$0xff]
        %v423 = vld [vmem:[#allocation2 + $0x38] sm:$0xff]
        %v424 = vadd.f32 %v408, 0.0
        %v425 = vadd.f32 %v409, 0.0
        %v426 = vadd.f32 %v410, 0.0
        %v427 = vadd.f32 %v411, 0.0
        %v428 = vadd.f32 %v412, 0.0
        %v429 = vadd.f32 %v413, 0.0
        %v430 = vadd.f32 %v414, 0.0
        %v431 = vadd.f32 %v415, 0.0
        %v432 = vadd.f32 %v416, %v424
        %v433 = vadd.f32 %v417, %v425
        %v434 = vadd.f32 %v418, %v426
        %v435 = vadd.f32 %v419, %v427
        %v436 = vadd.f32 %v420, %v428
        %v437 = vadd.f32 %v421, %v429
        %v438 = vadd.f32 %v422, %v430
        %v439 = vadd.f32 %v423, %v431
        %440 = vst [vmem:[#allocation2] sm:$0xff] %v432
        %441 = vst [vmem:[#allocation2 + $0x8] sm:$0xff] %v433
        %442 = vst [vmem:[#allocation2 + $0x10] sm:$0xff] %v434
        %443 = vst [vmem:[#allocation2 + $0x18] sm:$0xff] %v435
        %444 = vst [vmem:[#allocation2 + $0x20] sm:$0xff] %v436
        %445 = vst [vmem:[#allocation2 + $0x28] sm:$0xff] %v437
        %446 = vst [vmem:[#allocation2 + $0x30] sm:$0xff] %v438
        %447 = vst [vmem:[#allocation2 + $0x38] sm:$0xff] %v439
      $region36: #{ranknet_bce_loss.1} parent=27 // pred_fallthru
        _
      %p448 = scmp.eq.s32.totalorder %s237, %s239
      // Predicated region
      $region37: #{ranknet_bce_loss.1} parent=27 // pred_check
        %p449 = pneg %p448
      $region38: #{ranknet_bce_loss.1} parent=27 // pred_check_branch
        %451 = sbr.rel (%p449) target = $region40
      $region39: #{ranknet_bce_loss.1} parent=27 // pred_region
        %v452 = vld [vmem:[%s215] sm:$0xff]
        %v453 = vld [vmem:[%s215 + $0x8] sm:$0xff]
        %v454 = vld [vmem:[%s215 + $0x10] sm:$0xff]
        %v455 = vld [vmem:[%s215 + $0x18] sm:$0xff]
        %v456 = vld [vmem:[%s215 + $0x20] sm:$0xff]
        %v457 = vld [vmem:[%s215 + $0x28] sm:$0xff]
        %v458 = vld [vmem:[%s215 + $0x30] sm:$0xff]
        %v459 = vld [vmem:[%s215 + $0x38] sm:$0xff]
        %v460 = vld [vmem:[%s228] sm:$0xff]
        %v461 = vld [vmem:[%s228 + $0x8] sm:$0xff]
        %v462 = vld [vmem:[%s228 + $0x10] sm:$0xff]
        %v463 = vld [vmem:[%s228 + $0x18] sm:$0xff]
        %v464 = vld [vmem:[%s228 + $0x20] sm:$0xff]
        %v465 = vld [vmem:[%s228 + $0x28] sm:$0xff]
        %v466 = vld [vmem:[%s228 + $0x30] sm:$0xff]
        %v467 = vld [vmem:[%s228 + $0x38] sm:$0xff]
        %v468 = vsub.f32 %v452, %v460
        %v469 = vsub.f32 %v453, %v461
        %v470 = vsub.f32 %v454, %v462
        %v471 = vsub.f32 %v455, %v463
        %v472 = vsub.f32 %v456, %v464
        %v473 = vsub.f32 %v457, %v465
        %v474 = vsub.f32 %v458, %v466
        %v475 = vsub.f32 %v459, %v467
        %v476 = vsub.f32 0.0, %v468
        %v477 = vsub.f32 0.0, %v469
        %v478 = vsub.f32 0.0, %v470
        %v479 = vsub.f32 0.0, %v471
        %v480 = vsub.f32 0.0, %v472
        %v481 = vsub.f32 0.0, %v473
        %v482 = vsub.f32 0.0, %v474
        %v483 = vsub.f32 0.0, %v475
        %v484 = vmax.f32 %v476, 0.0
        %v485 = vmax.f32 %v477, 0.0
        %v486 = vmax.f32 %v478, 0.0
        %v487 = vmax.f32 %v479, 0.0
        %v488 = vmax.f32 %v480, 0.0
        %v489 = vmax.f32 %v481, 0.0
        %v490 = vmax.f32 %v482, 0.0
        %v491 = vmax.f32 %v483, 0.0
        %v492 = vand.u32 2147483647, %v468
        %v493 = vand.u32 2147483647, %v469
        %v494 = vand.u32 2147483647, %v470
        %v495 = vand.u32 2147483647, %v471
        %v496 = vand.u32 2147483647, %v472
        %v497 = vand.u32 2147483647, %v473
        %v498 = vand.u32 2147483647, %v474
        %v499 = vand.u32 2147483647, %v475
        %v500 = vsub.f32 0.0, %v492
        %v501 = vsub.f32 0.0, %v493
        %v502 = vsub.f32 0.0, %v494
        %v503 = vsub.f32 0.0, %v495
        %v504 = vsub.f32 0.0, %v496
        %v505 = vsub.f32 0.0, %v497
        %v506 = vsub.f32 0.0, %v498
        %v507 = vsub.f32 0.0, %v499
        %v508 = vmul.f32 %v500, 1.442695
        %v509 = vpow.pop %v508
        %v510 = vmul.f32 %v501, 1.442695
        %v511 = vpow.pop %v510
        %v512 = vmul.f32 %v502, 1.442695
        %v513 = vpow.pop %v512
        %v514 = vmul.f32 %v503, 1.442695
        %v515 = vpow.pop %v514
        %v516 = vmul.f32 %v504, 1.442695
        %v517 = vpow.pop %v516
        %v518 = vmul.f32 %v505, 1.442695
        %v519 = vpow.pop %v518
        %v520 = vmul.f32 %v506, 1.442695
        %v521 = vpow.pop %v520
        %v522 = vmul.f32 %v507, 1.442695
        %v523 = vpow.pop %v522
        %v524 = vadd.f32 %v509, 1.0
        %v525 = vlog2.pop %v524
        %v526 = vmul.f32 %v525, 0.6931472
        %v527 = vmul.f32 -0.5, %v509
        %v528 = vadd.f32 %v527, 1.0
        %v529 = vmul.f32 %v528, %v509
        %v530 = vand.u32 2147483647, %v509
        %vm531 = vcmp.lt.f32.partialorder %v530, 0.0004427343
        %v532 = vsel %vm531, %v529, %v526
        %v533 = vadd.f32 %v511, 1.0
        %v534 = vlog2.pop %v533
        %v535 = vmul.f32 %v534, 0.6931472
        %v536 = vmul.f32 -0.5, %v511
        %v537 = vadd.f32 %v536, 1.0
        %v538 = vmul.f32 %v537, %v511
        %v539 = vand.u32 2147483647, %v511
        %vm540 = vcmp.lt.f32.partialorder %v539, 0.0004427343
        %v541 = vsel %vm540, %v538, %v535
        %v542 = vadd.f32 %v513, 1.0
        %v543 = vlog2.pop %v542
        %v544 = vmul.f32 %v543, 0.6931472
        %v545 = vmul.f32 -0.5, %v513
        %v546 = vadd.f32 %v545, 1.0
        %v547 = vmul.f32 %v546, %v513
        %v548 = vand.u32 2147483647, %v513
        %vm549 = vcmp.lt.f32.partialorder %v548, 0.0004427343
        %v550 = vsel %vm549, %v547, %v544
        %v551 = vadd.f32 %v515, 1.0
        %v552 = vlog2.pop %v551
        %v553 = vmul.f32 %v552, 0.6931472
        %v554 = vmul.f32 -0.5, %v515
        %v555 = vadd.f32 %v554, 1.0
        %v556 = vmul.f32 %v555, %v515
        %v557 = vand.u32 2147483647, %v515
        %vm558 = vcmp.lt.f32.partialorder %v557, 0.0004427343
        %v559 = vsel %vm558, %v556, %v553
        %v560 = vadd.f32 %v517, 1.0
        %v561 = vlog2.pop %v560
        %v562 = vmul.f32 %v561, 0.6931472
        %v563 = vmul.f32 -0.5, %v517
        %v564 = vadd.f32 %v563, 1.0
        %v565 = vmul.f32 %v564, %v517
        %v566 = vand.u32 2147483647, %v517
        %vm567 = vcmp.lt.f32.partialorder %v566, 0.0004427343
        %v568 = vsel %vm567, %v565, %v562
        %v569 = vadd.f32 %v519, 1.0
        %v570 = vlog2.pop %v569
        %v571 = vmul.f32 %v570, 0.6931472
        %v572 = vmul.f32 -0.5, %v519
        %v573 = vadd.f32 %v572, 1.0
        %v574 = vmul.f32 %v573, %v519
        %v575 = vand.u32 2147483647, %v519
        %vm576 = vcmp.lt.f32.partialorder %v575, 0.0004427343
        %v577 = vsel %vm576, %v574, %v571
        %v578 = vadd.f32 %v521, 1.0
        %v579 = vlog2.pop %v578
        %v580 = vmul.f32 %v579, 0.6931472
        %v581 = vmul.f32 -0.5, %v521
        %v582 = vadd.f32 %v581, 1.0
        %v583 = vmul.f32 %v582, %v521
        %v584 = vand.u32 2147483647, %v521
        %vm585 = vcmp.lt.f32.partialorder %v584, 0.0004427343
        %v586 = vsel %vm585, %v583, %v580
        %v587 = vadd.f32 %v523, 1.0
        %v588 = vlog2.pop %v587
        %v589 = vmul.f32 %v588, 0.6931472
        %v590 = vmul.f32 -0.5, %v523
        %v591 = vadd.f32 %v590, 1.0
        %v592 = vmul.f32 %v591, %v523
        %v593 = vand.u32 2147483647, %v523
        %vm594 = vcmp.lt.f32.partialorder %v593, 0.0004427343
        %v595 = vsel %vm594, %v592, %v589
        %v596 = vadd.f32 %v484, %v532
        %v597 = vadd.f32 %v485, %v541
        %v598 = vadd.f32 %v486, %v550
        %v599 = vadd.f32 %v487, %v559
        %v600 = vadd.f32 %v488, %v568
        %v601 = vadd.f32 %v489, %v577
        %v602 = vadd.f32 %v490, %v586
        %v603 = vadd.f32 %v491, %v595
        %v604 = vmin.f32 %v596, 100.0
        %v605 = vmin.f32 %v597, 100.0
        %v606 = vmin.f32 %v598, 100.0
        %v607 = vmin.f32 %v599, 100.0
        %v608 = vmin.f32 %v600, 100.0
        %v609 = vmin.f32 %v601, 100.0
        %v610 = vmin.f32 %v602, 100.0
        %v611 = vmin.f32 %v603, 100.0
        %v612 = vlaneseq
        %v613 = vshrl.u32 %v612, 7
        %v614 = vlaneseq
        %v615 = vand.u32 %v614, 127
        %v616 = vadd.s32 %v615, 128
        %v617 = vadd.s32 %v615, 256
        %v618 = vadd.s32 %v615, 384
        %v619 = vadd.s32 %v615, 512
        %v620 = vadd.s32 %v615, 640
        %v621 = vadd.s32 %v615, 768
        %v622 = vadd.s32 %v615, 896
        %s623 = smul.u32 %s237, 8
        %v624 = vstv %s623
        %v625 = vadd.s32 %v624, %v613
        %v626 = vmul.u32 %v625, 1024
        %v627 = vadd.s32 %v626, %v615
        %v628 = vadd.s32 %v626, %v616
        %v629 = vadd.s32 %v626, %v617
        %v630 = vadd.s32 %v626, %v618
        %v631 = vadd.s32 %v626, %v619
        %v632 = vadd.s32 %v626, %v620
        %v633 = vadd.s32 %v626, %v621
        %v634 = vadd.s32 %v626, %v622
        %v635 = vstv %s238
        %vm636 = vcmp.lt.s32.totalorder %v627, %v635
        %vm637 = vcmp.lt.s32.totalorder %v628, %v635
        %vm638 = vcmp.lt.s32.totalorder %v629, %v635
        %vm639 = vcmp.lt.s32.totalorder %v630, %v635
        %vm640 = vcmp.lt.s32.totalorder %v631, %v635
        %vm641 = vcmp.lt.s32.totalorder %v632, %v635
        %vm642 = vcmp.lt.s32.totalorder %v633, %v635
        %vm643 = vcmp.lt.s32.totalorder %v634, %v635
        %v644 = vsel %vm636, %v604, 0.0
        %v645 = vsel %vm637, %v605, 0.0
        %v646 = vsel %vm638, %v606, 0.0
        %v647 = vsel %vm639, %v607, 0.0
        %v648 = vsel %vm640, %v608, 0.0
        %v649 = vsel %vm641, %v609, 0.0
        %v650 = vsel %vm642, %v610, 0.0
        %v651 = vsel %vm643, %v611, 0.0
        %v652 = vld [vmem:[#allocation2] sm:$0xff]
        %v653 = vld [vmem:[#allocation2 + $0x8] sm:$0xff]
        %v654 = vld [vmem:[#allocation2 + $0x10] sm:$0xff]
        %v655 = vld [vmem:[#allocation2 + $0x18] sm:$0xff]
        %v656 = vld [vmem:[#allocation2 + $0x20] sm:$0xff]
        %v657 = vld [vmem:[#allocation2 + $0x28] sm:$0xff]
        %v658 = vld [vmem:[#allocation2 + $0x30] sm:$0xff]
        %v659 = vld [vmem:[#allocation2 + $0x38] sm:$0xff]
        %v660 = vadd.f32 %v644, 0.0
        %v661 = vadd.f32 %v645, 0.0
        %v662 = vadd.f32 %v646, 0.0
        %v663 = vadd.f32 %v647, 0.0
        %v664 = vadd.f32 %v648, 0.0
        %v665 = vadd.f32 %v649, 0.0
        %v666 = vadd.f32 %v650, 0.0
        %v667 = vadd.f32 %v651, 0.0
        %v668 = vadd.f32 %v652, %v660
        %v669 = vadd.f32 %v653, %v661
        %v670 = vadd.f32 %v654, %v662
        %v671 = vadd.f32 %v655, %v663
        %v672 = vadd.f32 %v656, %v664
        %v673 = vadd.f32 %v657, %v665
        %v674 = vadd.f32 %v658, %v666
        %v675 = vadd.f32 %v659, %v667
        %676 = vst [vmem:[#allocation2] sm:$0xff] %v668
        %677 = vst [vmem:[#allocation2 + $0x8] sm:$0xff] %v669
        %678 = vst [vmem:[#allocation2 + $0x10] sm:$0xff] %v670
        %679 = vst [vmem:[#allocation2 + $0x18] sm:$0xff] %v671
        %680 = vst [vmem:[#allocation2 + $0x20] sm:$0xff] %v672
        %681 = vst [vmem:[#allocation2 + $0x28] sm:$0xff] %v673
        %682 = vst [vmem:[#allocation2 + $0x30] sm:$0xff] %v674
        %683 = vst [vmem:[#allocation2 + $0x38] sm:$0xff] %v675
      $region40: #{ranknet_bce_loss.1} parent=27 // pred_fallthru
        _
      // Predicated region
      $region41: #{ranknet_bce_loss.1} parent=27 // pred_check
        %p684 = pneg %p240
      $region42: #{ranknet_bce_loss.1} parent=27 // pred_check_branch
        %686 = sbr.rel (%p684) target = $region44
      $region43: #{ranknet_bce_loss.1} parent=27 // pred_region
        %v687 = vld [vmem:[#allocation2] sm:$0xff]
        %v688 = vld [vmem:[#allocation2 + $0x8] sm:$0xff]
        %v689 = vld [vmem:[#allocation2 + $0x10] sm:$0xff]
        %v690 = vld [vmem:[#allocation2 + $0x18] sm:$0xff]
        %v691 = vld [vmem:[#allocation2 + $0x20] sm:$0xff]
        %v692 = vld [vmem:[#allocation2 + $0x28] sm:$0xff]
        %v693 = vld [vmem:[#allocation2 + $0x30] sm:$0xff]
        %v694 = vld [vmem:[#allocation2 + $0x38] sm:$0xff]
        %v695 = vadd.f32 %v687, %v688
        %v696 = vadd.f32 %v695, %v689
        %v697 = vadd.f32 %v696, %v690
        %v698 = vadd.f32 %v697, %v691
        %v699 = vadd.f32 %v698, %v692
        %v700 = vadd.f32 %v699, %v693
        %v701 = vadd.f32 %v700, %v694
        %702 = vadd.xlane.f32.xlu0 %v701
        %v703 = vpop.xlane.xlu0 %702
        %v704 = vrot.slane %v703, 4
        %v705 = vadd.f32 %v703, %v704
        %v706 = vrot.slane %v705, 2
        %v707 = vadd.f32 %v705, %v706
        %v708 = vrot.slane %v707, 1
        %v709 = vadd.f32 %v707, %v708
        %s710 = vtos %v709
        %v711 = vstv %s710
        %712 = vst [vmem:[%s236] sm:$0xff] %v711
      $region44: #{ranknet_bce_loss.1} parent=27 // pred_fallthru
        _
      %p713 = scmp.lt.s32.totalorder %s24, 1
      %s714 = scalar_select %p713, %s24, 1
      %s715 = smul.addr %s714, 8
      %s716 = scalar_lea.vmem %s3, %s715
      // Predicated region
      $region45: #{ranknet_bce_loss.1} parent=27 // pred_check
        %p717 = pneg %p118
      $region46: #{ranknet_bce_loss.1} parent=27 // pred_check_branch
        %719 = sbr.rel (%p717) target = $region48
      $region47: #{ranknet_bce_loss.1} parent=27 // pred_region
        _
      $region48: #{ranknet_bce_loss.1} parent=27 // pred_fallthru
        _
    $region28: #{ranknet_bce_loss.1} parent=5 // pred_fallthru
      _
    %p720 = scmp.le.s32.totalorder 2, %s15
    // Predicated region
    $region49: #{ranknet_bce_loss.1} parent=5 // pred_check
      %p721 = pneg %p720
    $region50: #{ranknet_bce_loss.1} parent=5 // pred_check_branch
      %723 = sbr.rel (%p721) target = $region52
    $region51: #{ranknet_bce_loss.1} parent=5 // pred_region
      %s724 = ssub.s32 %s15, 2
      // Predicated region
      $region53: #{ranknet_bce_loss.1} parent=51 // pred_check
        %p725 = pneg %p124
      $region54: #{ranknet_bce_loss.1} parent=51 // pred_check_branch
        %727 = sbr.rel (%p725) target = $region56
      $region55: #{ranknet_bce_loss.1} parent=51 // pred_region
        %p728 = scmp.lt.s32.totalorder %s26, 1
        %s729 = scalar_select %p728, %s26, 1
        %s730 = smul.addr %s729, 8
        %s731 = scalar_lea.vmem %s3, %s730
      $region56: #{ranknet_bce_loss.1} parent=51 // pred_fallthru
        _
    $region52: #{ranknet_bce_loss.1} parent=5 // pred_fallthru
      _
  $region6: #{ranknet_bce_loss.1} parent=0 // loop_footer
    %s19 = sadd.s32 1, %s15
  $region7: #{ranknet_bce_loss.1} parent=0 // loop_footer_branch
    %14 = sbr.rel target = $region3
  $region8: #{ranknet_bce_loss.1} parent=0 // loop_exit
    _

</llo_original>
